<compile_context>
chip_gen: v7x
topology: tpu7x:2x2x1
jax: 0.10.0
libtpu: 0.0.40
codegen_flags: <defaults>
</compile_context>

<pallas_src>
import functools

import jax
import jax.numpy as jnp
import numpy as np
from jax import lax
from jax.experimental import pallas as pl
from jax.experimental.pallas import tpu as pltpu


def _depth_avg_pool_kernel(x_ref, d_ref, o_ref, *scratch, K, S, P, H, W,
                           Ho, Wo, TH, alpha, direct):
    if direct:
        (w_ref,) = scratch
        xpad_ref = None
    else:
        xpad_ref, w_ref = scratch

    c_tile = pl.program_id(1)
    taps = [(di, dj) for di in range(K) for dj in range(K)]
    kc = K // 2
    Hp, Wp = H + 2 * P, W + 2 * P

    # Full-output windows (static offsets) used for the depth-weight pass.
    def full_rows(off):
        return pl.ds(off, Ho) if S == 1 else pl.ds(off, Ho, stride=S)

    def full_cols(off):
        return pl.ds(off, Wo) if S == 1 else pl.ds(off, Wo, stride=S)

    # ---- stage x into a zero-bordered f32 scratch only when padding or a
    # ---- dtype cast is required; zero only the border strips, once per image.
    if not direct:
        if P > 0:
            @pl.when(c_tile == 0)
            def _zero_border():
                tc = xpad_ref.shape[0]
                xpad_ref[:, 0:P, :] = jnp.zeros((tc, P, Wp), jnp.float32)
                xpad_ref[:, P + H:Hp, :] = jnp.zeros((tc, P, Wp), jnp.float32)
                xpad_ref[:, P:P + H, 0:P] = jnp.zeros((tc, H, P), jnp.float32)
                xpad_ref[:, P:P + H, P + W:Wp] = jnp.zeros((tc, H, P),
                                                           jnp.float32)
        xpad_ref[:, P:P + H, P:P + W] = x_ref[...].astype(jnp.float32)

    # ---- normalized depth weights: computed once per batch image (at the
    # ---- first channel tile) and reused by all later channel tiles.
    @pl.when(c_tile == 0)
    def _weights():
        d_center = d_ref[full_rows(kc), full_cols(kc)].astype(jnp.float32)
        den = jnp.zeros((Ho, Wo), jnp.float32)
        for t, (di, dj) in enumerate(taps):
            d_tap = d_ref[full_rows(di), full_cols(dj)].astype(jnp.float32)
            w = jnp.exp(-alpha * jnp.abs(d_center - d_tap))
            w_ref[t] = w
            den = den + w
        # den >= 1 (the center tap is exp(0) == 1); exact reciprocal keeps the
        # 1e-5 tolerance.  Folding it into the weights removes the per-channel
        # normalization multiply in the hot loop.
        inv = pl.reciprocal(den, approx=False)
        for t in range(K * K):
            w_ref[t] = w_ref[t] * inv

    # ---- weighted accumulation: per channel, per row strip, taps innermost;
    # ---- the accumulator stays in vregs (never touches VMEM per tap).
    def accumulate(c, r0, th):
        acc = None
        for t, (di, dj) in enumerate(taps):
            if S == 1:
                rows = pl.ds(r0 + di, th)
                cols = pl.ds(dj, Wo)
            else:
                rows = pl.ds(r0 * S + di, th, stride=S)
                cols = pl.ds(dj, Wo, stride=S)
            src = x_ref if direct else xpad_ref
            xw = src[c, rows, cols].astype(jnp.float32)
            term = w_ref[t, pl.ds(r0, th), :] * xw
            acc = term if acc is None else acc + term
        o_ref[c, pl.ds(r0, th), :] = acc.astype(o_ref.dtype)

    def chan_body(c, carry):
        if Ho <= TH:                      # static: single full-height strip
            accumulate(c, 0, Ho)
        else:
            nfull = Ho // TH

            def row_body(hb, carry2):
                accumulate(c, pl.multiple_of(hb * TH, TH), TH)
                return carry2

            lax.fori_loop(0, nfull, row_body, 0)
            rem = Ho % TH
            if rem:
                accumulate(c, nfull * TH, rem)
        return carry

    lax.fori_loop(0, o_ref.shape[0], chan_body, 0)


def depth_avg_pooling(x, depth, kernel_size, stride=1, padding=0, alpha=8.3,
                      *, row_block=None):
    """x: (B, C, H, W), depth: (B, 1, H, W). Returns (B, C, Ho, Wo) float32."""
    assert depth.shape[1] == 1, "kernel implements the single-channel-depth case"
    K, S, P = int(kernel_size), int(stride), int(padding)
    B, C, H, W = x.shape
    Hp, Wp = H + 2 * P, W + 2 * P
    Ho = (Hp - K + S) // S
    Wo = (Wp - K + S) // S
    assert Ho > 0 and Wo > 0

    # Fast path: no padding and already f32 -> read tap windows straight from
    # the input block (no staging copy / cast pass).
    direct = (P == 0) and (x.dtype == jnp.float32)

    # Only the tiny single-channel depth plane is padded host-side; the large
    # feature map is zero-padded in-kernel (border strips only).
    d_p = jnp.pad(depth, ((0, 0), (0, 0), (P, P), (P, P))) if P else depth

    # ---- per-generation VMEM budgeting ------------------------------------
    def ceil8(v):
        return -(-v // 8) * 8

    def ceil128(v):
        return -(-v // 128) * 128

    def padded_bytes(lead, sub, lane, itemsize):
        return lead * ceil8(sub) * ceil128(lane) * itemsize

    try:
        vmem_phys = int(pltpu.get_tpu_info().vmem_capacity_bytes)
    except Exception:
        vmem_phys = 64 << 20            # conservative: v7x per-core VMEM

    if vmem_phys >= (96 << 20):         # v5e / v6e: 128 MiB physical VMEM
        need_target, limit_cap = 48 << 20, 100 << 20
    else:                               # v7x: 64 MiB per TensorCore
        need_target, limit_cap = 26 << 20, 44 << 20

    w_scratch = padded_bytes(K * K, Ho, Wo, 4)

    def vmem_need(tc):
        n = 2 * padded_bytes(tc, H, W, x.dtype.itemsize)      # x blocks (x2 buf)
        n += 2 * padded_bytes(1, Hp, Wp, d_p.dtype.itemsize)  # depth blocks
        n += 2 * padded_bytes(tc, Ho, Wo, 4)                  # output blocks
        n += w_scratch                                        # weight scratch
        if not direct:
            n += padded_bytes(tc, Hp, Wp, 4)                  # staging scratch
        return n

    TC = 1
    for t in range(C, 0, -1):
        if C % t == 0 and vmem_need(t) <= need_target:
            TC = t
            break
    NC = C // TC
    need = vmem_need(TC)
    vmem_limit = int(min(max(int(need * 1.25) + (4 << 20), 16 << 20), limit_cap))

    # Row-strip height: keep the per-channel accumulator in ~<= 8 vregs.
    lane_tiles = max(1, -(-Wo // 128))
    if row_block is None:
        TH = min(Ho, max(8, 64 // lane_tiles))
    else:
        TH = max(1, min(int(row_block), Ho))

    kernel = functools.partial(
        _depth_avg_pool_kernel, K=K, S=S, P=P, H=H, W=W, Ho=Ho, Wo=Wo,
        TH=TH, alpha=float(alpha), direct=direct)

    scratch_shapes = []
    if not direct:
        scratch_shapes.append(pltpu.VMEM((TC, Hp, Wp), jnp.float32))
    scratch_shapes.append(pltpu.VMEM((K * K, Ho, Wo), jnp.float32))

    cost = pl.CostEstimate(
        flops=B * K * K * Ho * Wo * (5 + 2 * C),
        transcendentals=B * K * K * Ho * Wo,
        bytes_accessed=(x.size * x.dtype.itemsize
                        + d_p.size * d_p.dtype.itemsize
                        + B * C * Ho * Wo * 4),
    )

    return pl.pallas_call(
        kernel,
        out_shape=jax.ShapeDtypeStruct((B, C, Ho, Wo), jnp.float32),
        grid=(B, NC),
        in_specs=[
            pl.BlockSpec((None, TC, H, W), lambda b, c: (b, c, 0, 0)),
            pl.BlockSpec((None, None, Hp, Wp), lambda b, c: (b, 0, 0, 0)),
        ],
        out_specs=pl.BlockSpec((None, TC, Ho, Wo), lambda b, c: (b, c, 0, 0)),
        scratch_shapes=scratch_shapes,
        compiler_params=pltpu.CompilerParams(
            dimension_semantics=("parallel", "arbitrary"),
            vmem_limit_bytes=vmem_limit),
        cost_estimate=cost,
    )(x, d_p)


def _reference(x, depth, K, S, P, alpha):
    xp = np.pad(np.asarray(x, np.float32), ((0, 0), (0, 0), (P, P), (P, P)))
    dp = np.pad(np.asarray(depth, np.float32), ((0, 0), (0, 0), (P, P), (P, P)))
    B, C, Hp, Wp = xp.shape
    Ho = (Hp - K + S) // S
    Wo = (Wp - K + S) // S
    out = np.zeros((B, C, Ho, Wo), np.float32)
    for i in range(Ho):
        for j in range(Wo):
            xs, ys = i * S, j * S
            dw = dp[:, :, xs:xs + K, ys:ys + K]
            iw = xp[:, :, xs:xs + K, ys:ys + K]
            center = dw[:, :, K // 2, K // 2][:, :, None, None]
            w = np.exp(-alpha * np.abs(center - dw))            # (B, 1, K, K)
            total = w.sum(axis=(-1, -2)).sum(axis=1)            # (B,)
            out[:, :, i, j] = (w * iw).sum(axis=(-1, -2)) / total[:, None]
    return out


if __name__ == "__main__":
    key = jax.random.PRNGKey(0)
    kx, kd = jax.random.split(key)
    B, C, H, W = 2, 4, 16, 16
    x = jax.random.normal(kx, (B, C, H, W), jnp.float32)
    depth = jax.random.uniform(kd, (B, 1, H, W), jnp.float32, 1.0, 5.0)

    # Small configs: staged path (P>0), direct path (P==0), larger kernel.
    for (K, S, P) in [(3, 1, 1), (3, 1, 0), (5, 1, 2)]:
        out = jax.block_until_ready(depth_avg_pooling(x, depth, K, S, P, 8.3))
        ref = _reference(x, depth, K, S, P, 8.3)
        np.testing.assert_allclose(np.asarray(out), ref, rtol=1e-5, atol=1e-5)

    # Exercise the in-kernel row-strip loop (register-resident accumulation),
    # including the remainder strip (Ho=30 with TH=8).
    kx2, kd2 = jax.random.split(jax.random.PRNGKey(1))
    x2 = jax.random.normal(kx2, (2, 4, 32, 32), jnp.float32)
    d2 = jax.random.uniform(kd2, (2, 1, 32, 32), jnp.float32, 1.0, 5.0)
    for (K, S, P) in [(3, 1, 0), (3, 1, 1)]:
        out = jax.block_until_ready(
            depth_avg_pooling(x2, d2, K, S, P, 8.3, row_block=8))
        ref = _reference(x2, d2, K, S, P, 8.3)
        np.testing.assert_allclose(np.asarray(out), ref, rtol=1e-5, atol=1e-5)

    print("KERNEL_OK")
</pallas_src>

<mosaic_0001>
module attributes {stable_mosaic.version = 11 : i64} {
  func.func @_depth_avg_pool_kernel(%arg0: i32, %arg1: i32, %arg2: memref<1x4x16x16xf32, #tpu.memory_space<vmem>>, %arg3: memref<1x1x18x18xf32, #tpu.memory_space<vmem>>, %arg4: memref<1x4x16x16xf32, #tpu.memory_space<vmem>>, %arg5: memref<4x18x18xf32, #tpu.memory_space<vmem>>, %arg6: memref<9x16x16xf32, #tpu.memory_space<vmem>>) attributes {dimension_semantics = [#tpu.dimension_semantics<parallel>, #tpu.dimension_semantics<arbitrary>], iteration_bounds = array<i64: 2, 1>, scalar_prefetch = 0 : i64, scratch_operands = 2 : i64, tpu.core_type = #tpu.core_type<tc>, window_params = [{transform_indices = @transform_0, window_bounds = array<i64: 1, 4, 16, 16>}, {transform_indices = @transform_1, window_bounds = array<i64: 1, 1, 18, 18>}, {transform_indices = @transform_2, window_bounds = array<i64: 1, 4, 16, 16>}]} {
    %c0_i32 = arith.constant 0 : i32
    %0 = arith.cmpi eq, %arg1, %c0_i32 : i32
    %1 = arith.extui %0 : i1 to i32
    %c0_i32_0 = arith.constant 0 : i32
    %2 = arith.cmpi ne, %1, %c0_i32_0 : i32
    scf.if %2 {
      %cst = arith.constant 0.000000e+00 : f32
      %10 = vector.broadcast %cst : f32 to vector<4x1x18xf32>
      %c0_10 = arith.constant 0 : index
      %c0_11 = arith.constant 0 : index
      %c0_12 = arith.constant 0 : index
      %11 = vector.load %arg5[%c0_10, %c0_11, %c0_12] : memref<4x18x18xf32, #tpu.memory_space<vmem>>, vector<4x1x18xf32>
      tpu.vector_store %arg5[%c0_10, %c0_11, %c0_12], %10 {strides = array<i32>} : memref<4x18x18xf32, #tpu.memory_space<vmem>>, vector<4x1x18xf32>,
      %cst_13 = arith.constant 0.000000e+00 : f32
      %12 = vector.broadcast %cst_13 : f32 to vector<4x1x18xf32>
      %c0_14 = arith.constant 0 : index
      %c17 = arith.constant 17 : index
      %c0_15 = arith.constant 0 : index
      %13 = vector.load %arg5[%c0_14, %c17, %c0_15] : memref<4x18x18xf32, #tpu.memory_space<vmem>>, vector<4x1x18xf32>
      tpu.vector_store %arg5[%c0_14, %c17, %c0_15], %12 {strides = array<i32>} : memref<4x18x18xf32, #tpu.memory_space<vmem>>, vector<4x1x18xf32>,
      %cst_16 = arith.constant 0.000000e+00 : f32
      %14 = vector.broadcast %cst_16 : f32 to vector<4x16x1xf32>
      %c0_17 = arith.constant 0 : index
      %c1_18 = arith.constant 1 : index
      %c0_19 = arith.constant 0 : index
      %15 = vector.load %arg5[%c0_17, %c1_18, %c0_19] : memref<4x18x18xf32, #tpu.memory_space<vmem>>, vector<4x16x1xf32>
      tpu.vector_store %arg5[%c0_17, %c1_18, %c0_19], %14 {strides = array<i32>} : memref<4x18x18xf32, #tpu.memory_space<vmem>>, vector<4x16x1xf32>,
      %cst_20 = arith.constant 0.000000e+00 : f32
      %16 = vector.broadcast %cst_20 : f32 to vector<4x16x1xf32>
      %c0_21 = arith.constant 0 : index
      %c1_22 = arith.constant 1 : index
      %c17_23 = arith.constant 17 : index
      %17 = vector.load %arg5[%c0_21, %c1_22, %c17_23] : memref<4x18x18xf32, #tpu.memory_space<vmem>>, vector<4x16x1xf32>
      tpu.vector_store %arg5[%c0_21, %c1_22, %c17_23], %16 {strides = array<i32>} : memref<4x18x18xf32, #tpu.memory_space<vmem>>, vector<4x16x1xf32>,
    } else {
    }
    %c0 = arith.constant 0 : index
    %c0_1 = arith.constant 0 : index
    %c0_2 = arith.constant 0 : index
    %c0_3 = arith.constant 0 : index
    %3 = vector.load %arg2[%c0, %c0_1, %c0_2, %c0_3] : memref<1x4x16x16xf32, #tpu.memory_space<vmem>>, vector<1x4x16x16xf32>
    %4 = vector.shape_cast %3 : vector<1x4x16x16xf32> to vector<4x16x16xf32>
    %c0_4 = arith.constant 0 : index
    %c1 = arith.constant 1 : index
    %c1_5 = arith.constant 1 : index
    %5 = vector.load %arg5[%c0_4, %c1, %c1_5] : memref<4x18x18xf32, #tpu.memory_space<vmem>>, vector<4x16x16xf32>
    tpu.vector_store %arg5[%c0_4, %c1, %c1_5], %4 {strides = array<i32>} : memref<4x18x18xf32, #tpu.memory_space<vmem>>, vector<4x16x16xf32>,
    %c0_i32_6 = arith.constant 0 : i32
    %6 = arith.cmpi eq, %arg1, %c0_i32_6 : i32
    %7 = arith.extui %6 : i1 to i32
    %c0_i32_7 = arith.constant 0 : i32
    %8 = arith.cmpi ne, %7, %c0_i32_7 : i32
    scf.if %8 {
      %c0_10 = arith.constant 0 : index
      %c0_11 = arith.constant 0 : index
      %c1_12 = arith.constant 1 : index
      %c1_13 = arith.constant 1 : index
      %10 = vector.load %arg3[%c0_10, %c0_11, %c1_12, %c1_13] : memref<1x1x18x18xf32, #tpu.memory_space<vmem>>, vector<1x1x16x16xf32>
      %11 = vector.shape_cast %10 : vector<1x1x16x16xf32> to vector<16x16xf32>
      %cst = arith.constant 0.000000e+00 : f32
      %12 = vector.broadcast %cst : f32 to vector<16x16xf32>
      %c0_14 = arith.constant 0 : index
      %c0_15 = arith.constant 0 : index
      %c0_16 = arith.constant 0 : index
      %c0_17 = arith.constant 0 : index
      %13 = vector.load %arg3[%c0_14, %c0_15, %c0_16, %c0_17] : memref<1x1x18x18xf32, #tpu.memory_space<vmem>>, vector<1x1x16x16xf32>
      %14 = vector.shape_cast %13 : vector<1x1x16x16xf32> to vector<16x16xf32>
      %15 = arith.subf %11, %14 : vector<16x16xf32>
      %16 = math.absf %15 : vector<16x16xf32>
      %cst_18 = arith.constant -8.300000e+00 : f32
      %17 = vector.broadcast %cst_18 : f32 to vector<16x16xf32>
      %18 = arith.mulf %17, %16 : vector<16x16xf32>
      %19 = math.exp %18 : vector<16x16xf32>
      %c0_19 = arith.constant 0 : index
      %c0_20 = arith.constant 0 : index
      %c0_21 = arith.constant 0 : index
      %20 = vector.load %arg6[%c0_19, %c0_20, %c0_21] : memref<9x16x16xf32, #tpu.memory_space<vmem>>, vector<1x16x16xf32>
      %21 = vector.shape_cast %20 : vector<1x16x16xf32> to vector<16x16xf32>
      %22 = vector.shape_cast %19 : vector<16x16xf32> to vector<1x16x16xf32>
      tpu.vector_store %arg6[%c0_19, %c0_20, %c0_21], %22 {strides = array<i32>} : memref<9x16x16xf32, #tpu.memory_space<vmem>>, vector<1x16x16xf32>,
      %23 = arith.addf %12, %19 : vector<16x16xf32>
      %c0_22 = arith.constant 0 : index
      %c0_23 = arith.constant 0 : index
      %c0_24 = arith.constant 0 : index
      %c1_25 = arith.constant 1 : index
      %24 = vector.load %arg3[%c0_22, %c0_23, %c0_24, %c1_25] : memref<1x1x18x18xf32, #tpu.memory_space<vmem>>, vector<1x1x16x16xf32>
      %25 = vector.shape_cast %24 : vector<1x1x16x16xf32> to vector<16x16xf32>
      %26 = arith.subf %11, %25 : vector<16x16xf32>
      %27 = math.absf %26 : vector<16x16xf32>
      %cst_26 = arith.constant -8.300000e+00 : f32
      %28 = vector.broadcast %cst_26 : f32 to vector<16x16xf32>
      %29 = arith.mulf %28, %27 : vector<16x16xf32>
      %30 = math.exp %29 : vector<16x16xf32>
      %c1_27 = arith.constant 1 : index
      %c0_28 = arith.constant 0 : index
      %c0_29 = arith.constant 0 : index
      %31 = vector.load %arg6[%c1_27, %c0_28, %c0_29] : memref<9x16x16xf32, #tpu.memory_space<vmem>>, vector<1x16x16xf32>
      %32 = vector.shape_cast %31 : vector<1x16x16xf32> to vector<16x16xf32>
      %33 = vector.shape_cast %30 : vector<16x16xf32> to vector<1x16x16xf32>
      tpu.vector_store %arg6[%c1_27, %c0_28, %c0_29], %33 {strides = array<i32>} : memref<9x16x16xf32, #tpu.memory_space<vmem>>, vector<1x16x16xf32>,
      %34 = arith.addf %23, %30 : vector<16x16xf32>
      %c0_30 = arith.constant 0 : index
      %c0_31 = arith.constant 0 : index
      %c0_32 = arith.constant 0 : index
      %c2 = arith.constant 2 : index
      %35 = vector.load %arg3[%c0_30, %c0_31, %c0_32, %c2] : memref<1x1x18x18xf32, #tpu.memory_space<vmem>>, vector<1x1x16x16xf32>
      %36 = vector.shape_cast %35 : vector<1x1x16x16xf32> to vector<16x16xf32>
      %37 = arith.subf %11, %36 : vector<16x16xf32>
      %38 = math.absf %37 : vector<16x16xf32>
      %cst_33 = arith.constant -8.300000e+00 : f32
      %39 = vector.broadcast %cst_33 : f32 to vector<16x16xf32>
      %40 = arith.mulf %39, %38 : vector<16x16xf32>
      %41 = math.exp %40 : vector<16x16xf32>
      %c2_34 = arith.constant 2 : index
      %c0_35 = arith.constant 0 : index
      %c0_36 = arith.constant 0 : index
      %42 = vector.load %arg6[%c2_34, %c0_35, %c0_36] : memref<9x16x16xf32, #tpu.memory_space<vmem>>, vector<1x16x16xf32>
      %43 = vector.shape_cast %42 : vector<1x16x16xf32> to vector<16x16xf32>
      %44 = vector.shape_cast %41 : vector<16x16xf32> to vector<1x16x16xf32>
      tpu.vector_store %arg6[%c2_34, %c0_35, %c0_36], %44 {strides = array<i32>} : memref<9x16x16xf32, #tpu.memory_space<vmem>>, vector<1x16x16xf32>,
      %45 = arith.addf %34, %41 : vector<16x16xf32>
      %c0_37 = arith.constant 0 : index
      %c0_38 = arith.constant 0 : index
      %c1_39 = arith.constant 1 : index
      %c0_40 = arith.constant 0 : index
      %46 = vector.load %arg3[%c0_37, %c0_38, %c1_39, %c0_40] : memref<1x1x18x18xf32, #tpu.memory_space<vmem>>, vector<1x1x16x16xf32>
      %47 = vector.shape_cast %46 : vector<1x1x16x16xf32> to vector<16x16xf32>
      %48 = arith.subf %11, %47 : vector<16x16xf32>
      %49 = math.absf %48 : vector<16x16xf32>
      %cst_41 = arith.constant -8.300000e+00 : f32
      %50 = vector.broadcast %cst_41 : f32 to vector<16x16xf32>
      %51 = arith.mulf %50, %49 : vector<16x16xf32>
      %52 = math.exp %51 : vector<16x16xf32>
      %c3 = arith.constant 3 : index
      %c0_42 = arith.constant 0 : index
      %c0_43 = arith.constant 0 : index
      %53 = vector.load %arg6[%c3, %c0_42, %c0_43] : memref<9x16x16xf32, #tpu.memory_space<vmem>>, vector<1x16x16xf32>
      %54 = vector.shape_cast %53 : vector<1x16x16xf32> to vector<16x16xf32>
      %55 = vector.shape_cast %52 : vector<16x16xf32> to vector<1x16x16xf32>
      tpu.vector_store %arg6[%c3, %c0_42, %c0_43], %55 {strides = array<i32>} : memref<9x16x16xf32, #tpu.memory_space<vmem>>, vector<1x16x16xf32>,
      %56 = arith.addf %45, %52 : vector<16x16xf32>
      %c0_44 = arith.constant 0 : index
      %c0_45 = arith.constant 0 : index
      %c1_46 = arith.constant 1 : index
      %c1_47 = arith.constant 1 : index
      %57 = vector.load %arg3[%c0_44, %c0_45, %c1_46, %c1_47] : memref<1x1x18x18xf32, #tpu.memory_space<vmem>>, vector<1x1x16x16xf32>
      %58 = vector.shape_cast %57 : vector<1x1x16x16xf32> to vector<16x16xf32>
      %59 = arith.subf %11, %58 : vector<16x16xf32>
      %60 = math.absf %59 : vector<16x16xf32>
      %cst_48 = arith.constant -8.300000e+00 : f32
      %61 = vector.broadcast %cst_48 : f32 to vector<16x16xf32>
      %62 = arith.mulf %61, %60 : vector<16x16xf32>
      %63 = math.exp %62 : vector<16x16xf32>
      %c4 = arith.constant 4 : index
      %c0_49 = arith.constant 0 : index
      %c0_50 = arith.constant 0 : index
      %64 = vector.load %arg6[%c4, %c0_49, %c0_50] : memref<9x16x16xf32, #tpu.memory_space<vmem>>, vector<1x16x16xf32>
      %65 = vector.shape_cast %64 : vector<1x16x16xf32> to vector<16x16xf32>
      %66 = vector.shape_cast %63 : vector<16x16xf32> to vector<1x16x16xf32>
      tpu.vector_store %arg6[%c4, %c0_49, %c0_50], %66 {strides = array<i32>} : memref<9x16x16xf32, #tpu.memory_space<vmem>>, vector<1x16x16xf32>,
      %67 = arith.addf %56, %63 : vector<16x16xf32>
      %c0_51 = arith.constant 0 : index
      %c0_52 = arith.constant 0 : index
      %c1_53 = arith.constant 1 : index
      %c2_54 = arith.constant 2 : index
      %68 = vector.load %arg3[%c0_51, %c0_52, %c1_53, %c2_54] : memref<1x1x18x18xf32, #tpu.memory_space<vmem>>, vector<1x1x16x16xf32>
      %69 = vector.shape_cast %68 : vector<1x1x16x16xf32> to vector<16x16xf32>
      %70 = arith.subf %11, %69 : vector<16x16xf32>
      %71 = math.absf %70 : vector<16x16xf32>
      %cst_55 = arith.constant -8.300000e+00 : f32
      %72 = vector.broadcast %cst_55 : f32 to vector<16x16xf32>
      %73 = arith.mulf %72, %71 : vector<16x16xf32>
      %74 = math.exp %73 : vector<16x16xf32>
      %c5 = arith.constant 5 : index
      %c0_56 = arith.constant 0 : index
      %c0_57 = arith.constant 0 : index
      %75 = vector.load %arg6[%c5, %c0_56, %c0_57] : memref<9x16x16xf32, #tpu.memory_space<vmem>>, vector<1x16x16xf32>
      %76 = vector.shape_cast %75 : vector<1x16x16xf32> to vector<16x16xf32>
      %77 = vector.shape_cast %74 : vector<16x16xf32> to vector<1x16x16xf32>
      tpu.vector_store %arg6[%c5, %c0_56, %c0_57], %77 {strides = array<i32>} : memref<9x16x16xf32, #tpu.memory_space<vmem>>, vector<1x16x16xf32>,
      %78 = arith.addf %67, %74 : vector<16x16xf32>
      %c0_58 = arith.constant 0 : index
      %c0_59 = arith.constant 0 : index
      %c2_60 = arith.constant 2 : index
      %c0_61 = arith.constant 0 : index
      %79 = vector.load %arg3[%c0_58, %c0_59, %c2_60, %c0_61] : memref<1x1x18x18xf32, #tpu.memory_space<vmem>>, vector<1x1x16x16xf32>
      %80 = vector.shape_cast %79 : vector<1x1x16x16xf32> to vector<16x16xf32>
      %81 = arith.subf %11, %80 : vector<16x16xf32>
      %82 = math.absf %81 : vector<16x16xf32>
      %cst_62 = arith.constant -8.300000e+00 : f32
      %83 = vector.broadcast %cst_62 : f32 to vector<16x16xf32>
      %84 = arith.mulf %83, %82 : vector<16x16xf32>
      %85 = math.exp %84 : vector<16x16xf32>
      %c6 = arith.constant 6 : index
      %c0_63 = arith.constant 0 : index
      %c0_64 = arith.constant 0 : index
      %86 = vector.load %arg6[%c6, %c0_63, %c0_64] : memref<9x16x16xf32, #tpu.memory_space<vmem>>, vector<1x16x16xf32>
      %87 = vector.shape_cast %86 : vector<1x16x16xf32> to vector<16x16xf32>
      %88 = vector.shape_cast %85 : vector<16x16xf32> to vector<1x16x16xf32>
      tpu.vector_store %arg6[%c6, %c0_63, %c0_64], %88 {strides = array<i32>} : memref<9x16x16xf32, #tpu.memory_space<vmem>>, vector<1x16x16xf32>,
      %89 = arith.addf %78, %85 : vector<16x16xf32>
      %c0_65 = arith.constant 0 : index
      %c0_66 = arith.constant 0 : index
      %c2_67 = arith.constant 2 : index
      %c1_68 = arith.constant 1 : index
      %90 = vector.load %arg3[%c0_65, %c0_66, %c2_67, %c1_68] : memref<1x1x18x18xf32, #tpu.memory_space<vmem>>, vector<1x1x16x16xf32>
      %91 = vector.shape_cast %90 : vector<1x1x16x16xf32> to vector<16x16xf32>
      %92 = arith.subf %11, %91 : vector<16x16xf32>
      %93 = math.absf %92 : vector<16x16xf32>
      %cst_69 = arith.constant -8.300000e+00 : f32
      %94 = vector.broadcast %cst_69 : f32 to vector<16x16xf32>
      %95 = arith.mulf %94, %93 : vector<16x16xf32>
      %96 = math.exp %95 : vector<16x16xf32>
      %c7 = arith.constant 7 : index
      %c0_70 = arith.constant 0 : index
      %c0_71 = arith.constant 0 : index
      %97 = vector.load %arg6[%c7, %c0_70, %c0_71] : memref<9x16x16xf32, #tpu.memory_space<vmem>>, vector<1x16x16xf32>
      %98 = vector.shape_cast %97 : vector<1x16x16xf32> to vector<16x16xf32>
      %99 = vector.shape_cast %96 : vector<16x16xf32> to vector<1x16x16xf32>
      tpu.vector_store %arg6[%c7, %c0_70, %c0_71], %99 {strides = array<i32>} : memref<9x16x16xf32, #tpu.memory_space<vmem>>, vector<1x16x16xf32>,
      %100 = arith.addf %89, %96 : vector<16x16xf32>
      %c0_72 = arith.constant 0 : index
      %c0_73 = arith.constant 0 : index
      %c2_74 = arith.constant 2 : index
      %c2_75 = arith.constant 2 : index
      %101 = vector.load %arg3[%c0_72, %c0_73, %c2_74, %c2_75] : memref<1x1x18x18xf32, #tpu.memory_space<vmem>>, vector<1x1x16x16xf32>
      %102 = vector.shape_cast %101 : vector<1x1x16x16xf32> to vector<16x16xf32>
      %103 = arith.subf %11, %102 : vector<16x16xf32>
      %104 = math.absf %103 : vector<16x16xf32>
      %cst_76 = arith.constant -8.300000e+00 : f32
      %105 = vector.broadcast %cst_76 : f32 to vector<16x16xf32>
      %106 = arith.mulf %105, %104 : vector<16x16xf32>
      %107 = math.exp %106 : vector<16x16xf32>
      %c8 = arith.constant 8 : index
      %c0_77 = arith.constant 0 : index
      %c0_78 = arith.constant 0 : index
      %108 = vector.load %arg6[%c8, %c0_77, %c0_78] : memref<9x16x16xf32, #tpu.memory_space<vmem>>, vector<1x16x16xf32>
      %109 = vector.shape_cast %108 : vector<1x16x16xf32> to vector<16x16xf32>
      %110 = vector.shape_cast %107 : vector<16x16xf32> to vector<1x16x16xf32>
      tpu.vector_store %arg6[%c8, %c0_77, %c0_78], %110 {strides = array<i32>} : memref<9x16x16xf32, #tpu.memory_space<vmem>>, vector<1x16x16xf32>,
      %111 = arith.addf %100, %107 : vector<16x16xf32>
      %112 = tpu.reciprocal %111 : vector<16x16xf32> -> vector<16x16xf32>
      %c0_79 = arith.constant 0 : index
      %c0_80 = arith.constant 0 : index
      %c0_81 = arith.constant 0 : index
      %113 = vector.load %arg6[%c0_79, %c0_80, %c0_81] : memref<9x16x16xf32, #tpu.memory_space<vmem>>, vector<1x16x16xf32>
      %114 = vector.shape_cast %113 : vector<1x16x16xf32> to vector<16x16xf32>
      %115 = arith.mulf %114, %112 : vector<16x16xf32>
      %c0_82 = arith.constant 0 : index
      %c0_83 = arith.constant 0 : index
      %c0_84 = arith.constant 0 : index
      %116 = vector.load %arg6[%c0_82, %c0_83, %c0_84] : memref<9x16x16xf32, #tpu.memory_space<vmem>>, vector<1x16x16xf32>
      %117 = vector.shape_cast %116 : vector<1x16x16xf32> to vector<16x16xf32>
      %118 = vector.shape_cast %115 : vector<16x16xf32> to vector<1x16x16xf32>
      tpu.vector_store %arg6[%c0_82, %c0_83, %c0_84], %118 {strides = array<i32>} : memref<9x16x16xf32, #tpu.memory_space<vmem>>, vector<1x16x16xf32>,
      %c1_85 = arith.constant 1 : index
      %c0_86 = arith.constant 0 : index
      %c0_87 = arith.constant 0 : index
      %119 = vector.load %arg6[%c1_85, %c0_86, %c0_87] : memref<9x16x16xf32, #tpu.memory_space<vmem>>, vector<1x16x16xf32>
      %120 = vector.shape_cast %119 : vector<1x16x16xf32> to vector<16x16xf32>
      %121 = arith.mulf %120, %112 : vector<16x16xf32>
      %c1_88 = arith.constant 1 : index
      %c0_89 = arith.constant 0 : index
      %c0_90 = arith.constant 0 : index
      %122 = vector.load %arg6[%c1_88, %c0_89, %c0_90] : memref<9x16x16xf32, #tpu.memory_space<vmem>>, vector<1x16x16xf32>
      %123 = vector.shape_cast %122 : vector<1x16x16xf32> to vector<16x16xf32>
      %124 = vector.shape_cast %121 : vector<16x16xf32> to vector<1x16x16xf32>
      tpu.vector_store %arg6[%c1_88, %c0_89, %c0_90], %124 {strides = array<i32>} : memref<9x16x16xf32, #tpu.memory_space<vmem>>, vector<1x16x16xf32>,
      %c2_91 = arith.constant 2 : index
      %c0_92 = arith.constant 0 : index
      %c0_93 = arith.constant 0 : index
      %125 = vector.load %arg6[%c2_91, %c0_92, %c0_93] : memref<9x16x16xf32, #tpu.memory_space<vmem>>, vector<1x16x16xf32>
      %126 = vector.shape_cast %125 : vector<1x16x16xf32> to vector<16x16xf32>
      %127 = arith.mulf %126, %112 : vector<16x16xf32>
      %c2_94 = arith.constant 2 : index
      %c0_95 = arith.constant 0 : index
      %c0_96 = arith.constant 0 : index
      %128 = vector.load %arg6[%c2_94, %c0_95, %c0_96] : memref<9x16x16xf32, #tpu.memory_space<vmem>>, vector<1x16x16xf32>
      %129 = vector.shape_cast %128 : vector<1x16x16xf32> to vector<16x16xf32>
      %130 = vector.shape_cast %127 : vector<16x16xf32> to vector<1x16x16xf32>
      tpu.vector_store %arg6[%c2_94, %c0_95, %c0_96], %130 {strides = array<i32>} : memref<9x16x16xf32, #tpu.memory_space<vmem>>, vector<1x16x16xf32>,
      %c3_97 = arith.constant 3 : index
      %c0_98 = arith.constant 0 : index
      %c0_99 = arith.constant 0 : index
      %131 = vector.load %arg6[%c3_97, %c0_98, %c0_99] : memref<9x16x16xf32, #tpu.memory_space<vmem>>, vector<1x16x16xf32>
      %132 = vector.shape_cast %131 : vector<1x16x16xf32> to vector<16x16xf32>
      %133 = arith.mulf %132, %112 : vector<16x16xf32>
      %c3_100 = arith.constant 3 : index
      %c0_101 = arith.constant 0 : index
      %c0_102 = arith.constant 0 : index
      %134 = vector.load %arg6[%c3_100, %c0_101, %c0_102] : memref<9x16x16xf32, #tpu.memory_space<vmem>>, vector<1x16x16xf32>
      %135 = vector.shape_cast %134 : vector<1x16x16xf32> to vector<16x16xf32>
      %136 = vector.shape_cast %133 : vector<16x16xf32> to vector<1x16x16xf32>
      tpu.vector_store %arg6[%c3_100, %c0_101, %c0_102], %136 {strides = array<i32>} : memref<9x16x16xf32, #tpu.memory_space<vmem>>, vector<1x16x16xf32>,
      %c4_103 = arith.constant 4 : index
      %c0_104 = arith.constant 0 : index
      %c0_105 = arith.constant 0 : index
      %137 = vector.load %arg6[%c4_103, %c0_104, %c0_105] : memref<9x16x16xf32, #tpu.memory_space<vmem>>, vector<1x16x16xf32>
      %138 = vector.shape_cast %137 : vector<1x16x16xf32> to vector<16x16xf32>
      %139 = arith.mulf %138, %112 : vector<16x16xf32>
      %c4_106 = arith.constant 4 : index
      %c0_107 = arith.constant 0 : index
      %c0_108 = arith.constant 0 : index
      %140 = vector.load %arg6[%c4_106, %c0_107, %c0_108] : memref<9x16x16xf32, #tpu.memory_space<vmem>>, vector<1x16x16xf32>
      %141 = vector.shape_cast %140 : vector<1x16x16xf32> to vector<16x16xf32>
      %142 = vector.shape_cast %139 : vector<16x16xf32> to vector<1x16x16xf32>
      tpu.vector_store %arg6[%c4_106, %c0_107, %c0_108], %142 {strides = array<i32>} : memref<9x16x16xf32, #tpu.memory_space<vmem>>, vector<1x16x16xf32>,
      %c5_109 = arith.constant 5 : index
      %c0_110 = arith.constant 0 : index
      %c0_111 = arith.constant 0 : index
      %143 = vector.load %arg6[%c5_109, %c0_110, %c0_111] : memref<9x16x16xf32, #tpu.memory_space<vmem>>, vector<1x16x16xf32>
      %144 = vector.shape_cast %143 : vector<1x16x16xf32> to vector<16x16xf32>
      %145 = arith.mulf %144, %112 : vector<16x16xf32>
      %c5_112 = arith.constant 5 : index
      %c0_113 = arith.constant 0 : index
      %c0_114 = arith.constant 0 : index
      %146 = vector.load %arg6[%c5_112, %c0_113, %c0_114] : memref<9x16x16xf32, #tpu.memory_space<vmem>>, vector<1x16x16xf32>
      %147 = vector.shape_cast %146 : vector<1x16x16xf32> to vector<16x16xf32>
      %148 = vector.shape_cast %145 : vector<16x16xf32> to vector<1x16x16xf32>
      tpu.vector_store %arg6[%c5_112, %c0_113, %c0_114], %148 {strides = array<i32>} : memref<9x16x16xf32, #tpu.memory_space<vmem>>, vector<1x16x16xf32>,
      %c6_115 = arith.constant 6 : index
      %c0_116 = arith.constant 0 : index
      %c0_117 = arith.constant 0 : index
      %149 = vector.load %arg6[%c6_115, %c0_116, %c0_117] : memref<9x16x16xf32, #tpu.memory_space<vmem>>, vector<1x16x16xf32>
      %150 = vector.shape_cast %149 : vector<1x16x16xf32> to vector<16x16xf32>
      %151 = arith.mulf %150, %112 : vector<16x16xf32>
      %c6_118 = arith.constant 6 : index
      %c0_119 = arith.constant 0 : index
      %c0_120 = arith.constant 0 : index
      %152 = vector.load %arg6[%c6_118, %c0_119, %c0_120] : memref<9x16x16xf32, #tpu.memory_space<vmem>>, vector<1x16x16xf32>
      %153 = vector.shape_cast %152 : vector<1x16x16xf32> to vector<16x16xf32>
      %154 = vector.shape_cast %151 : vector<16x16xf32> to vector<1x16x16xf32>
      tpu.vector_store %arg6[%c6_118, %c0_119, %c0_120], %154 {strides = array<i32>} : memref<9x16x16xf32, #tpu.memory_space<vmem>>, vector<1x16x16xf32>,
      %c7_121 = arith.constant 7 : index
      %c0_122 = arith.constant 0 : index
      %c0_123 = arith.constant 0 : index
      %155 = vector.load %arg6[%c7_121, %c0_122, %c0_123] : memref<9x16x16xf32, #tpu.memory_space<vmem>>, vector<1x16x16xf32>
      %156 = vector.shape_cast %155 : vector<1x16x16xf32> to vector<16x16xf32>
      %157 = arith.mulf %156, %112 : vector<16x16xf32>
      %c7_124 = arith.constant 7 : index
      %c0_125 = arith.constant 0 : index
      %c0_126 = arith.constant 0 : index
      %158 = vector.load %arg6[%c7_124, %c0_125, %c0_126] : memref<9x16x16xf32, #tpu.memory_space<vmem>>, vector<1x16x16xf32>
      %159 = vector.shape_cast %158 : vector<1x16x16xf32> to vector<16x16xf32>
      %160 = vector.shape_cast %157 : vector<16x16xf32> to vector<1x16x16xf32>
      tpu.vector_store %arg6[%c7_124, %c0_125, %c0_126], %160 {strides = array<i32>} : memref<9x16x16xf32, #tpu.memory_space<vmem>>, vector<1x16x16xf32>,
      %c8_127 = arith.constant 8 : index
      %c0_128 = arith.constant 0 : index
      %c0_129 = arith.constant 0 : index
      %161 = vector.load %arg6[%c8_127, %c0_128, %c0_129] : memref<9x16x16xf32, #tpu.memory_space<vmem>>, vector<1x16x16xf32>
      %162 = vector.shape_cast %161 : vector<1x16x16xf32> to vector<16x16xf32>
      %163 = arith.mulf %162, %112 : vector<16x16xf32>
      %c8_130 = arith.constant 8 : index
      %c0_131 = arith.constant 0 : index
      %c0_132 = arith.constant 0 : index
      %164 = vector.load %arg6[%c8_130, %c0_131, %c0_132] : memref<9x16x16xf32, #tpu.memory_space<vmem>>, vector<1x16x16xf32>
      %165 = vector.shape_cast %164 : vector<1x16x16xf32> to vector<16x16xf32>
      %166 = vector.shape_cast %163 : vector<16x16xf32> to vector<1x16x16xf32>
      tpu.vector_store %arg6[%c8_130, %c0_131, %c0_132], %166 {strides = array<i32>} : memref<9x16x16xf32, #tpu.memory_space<vmem>>, vector<1x16x16xf32>,
    } else {
    }
    %c0_i32_8 = arith.constant 0 : i32
    %c4_i32 = arith.constant 4 : i32
    %9 = arith.addi %c0_i32_8, %c4_i32 : i32
    %c1_i32 = arith.constant 1 : i32
    scf.for %arg7 = %c0_i32_8 to %9 step %c1_i32  : i32 {
      %10 = arith.index_cast %arg7 : i32 to index
      %c0_10 = arith.constant 0 : index
      %c0_11 = arith.constant 0 : index
      %11 = vector.load %arg5[%10, %c0_10, %c0_11] : memref<4x18x18xf32, #tpu.memory_space<vmem>>, vector<1x16x16xf32>
      %12 = vector.shape_cast %11 : vector<1x16x16xf32> to vector<16x16xf32>
      %c0_12 = arith.constant 0 : index
      %c0_13 = arith.constant 0 : index
      %c0_14 = arith.constant 0 : index
      %13 = vector.load %arg6[%c0_12, %c0_13, %c0_14] : memref<9x16x16xf32, #tpu.memory_space<vmem>>, vector<1x16x16xf32>
      %14 = vector.shape_cast %13 : vector<1x16x16xf32> to vector<16x16xf32>
      %15 = arith.mulf %14, %12 : vector<16x16xf32>
      %16 = arith.index_cast %arg7 : i32 to index
      %c0_15 = arith.constant 0 : index
      %c1_16 = arith.constant 1 : index
      %17 = vector.load %arg5[%16, %c0_15, %c1_16] : memref<4x18x18xf32, #tpu.memory_space<vmem>>, vector<1x16x16xf32>
      %18 = vector.shape_cast %17 : vector<1x16x16xf32> to vector<16x16xf32>
      %c1_17 = arith.constant 1 : index
      %c0_18 = arith.constant 0 : index
      %c0_19 = arith.constant 0 : index
      %19 = vector.load %arg6[%c1_17, %c0_18, %c0_19] : memref<9x16x16xf32, #tpu.memory_space<vmem>>, vector<1x16x16xf32>
      %20 = vector.shape_cast %19 : vector<1x16x16xf32> to vector<16x16xf32>
      %21 = arith.mulf %20, %18 : vector<16x16xf32>
      %22 = arith.addf %15, %21 : vector<16x16xf32>
      %23 = arith.index_cast %arg7 : i32 to index
      %c0_20 = arith.constant 0 : index
      %c2 = arith.constant 2 : index
      %24 = vector.load %arg5[%23, %c0_20, %c2] : memref<4x18x18xf32, #tpu.memory_space<vmem>>, vector<1x16x16xf32>
      %25 = vector.shape_cast %24 : vector<1x16x16xf32> to vector<16x16xf32>
      %c2_21 = arith.constant 2 : index
      %c0_22 = arith.constant 0 : index
      %c0_23 = arith.constant 0 : index
      %26 = vector.load %arg6[%c2_21, %c0_22, %c0_23] : memref<9x16x16xf32, #tpu.memory_space<vmem>>, vector<1x16x16xf32>
      %27 = vector.shape_cast %26 : vector<1x16x16xf32> to vector<16x16xf32>
      %28 = arith.mulf %27, %25 : vector<16x16xf32>
      %29 = arith.addf %22, %28 : vector<16x16xf32>
      %30 = arith.index_cast %arg7 : i32 to index
      %c1_24 = arith.constant 1 : index
      %c0_25 = arith.constant 0 : index
      %31 = vector.load %arg5[%30, %c1_24, %c0_25] : memref<4x18x18xf32, #tpu.memory_space<vmem>>, vector<1x16x16xf32>
      %32 = vector.shape_cast %31 : vector<1x16x16xf32> to vector<16x16xf32>
      %c3 = arith.constant 3 : index
      %c0_26 = arith.constant 0 : index
      %c0_27 = arith.constant 0 : index
      %33 = vector.load %arg6[%c3, %c0_26, %c0_27] : memref<9x16x16xf32, #tpu.memory_space<vmem>>, vector<1x16x16xf32>
      %34 = vector.shape_cast %33 : vector<1x16x16xf32> to vector<16x16xf32>
      %35 = arith.mulf %34, %32 : vector<16x16xf32>
      %36 = arith.addf %29, %35 : vector<16x16xf32>
      %37 = arith.index_cast %arg7 : i32 to index
      %c1_28 = arith.constant 1 : index
      %c1_29 = arith.constant 1 : index
      %38 = vector.load %arg5[%37, %c1_28, %c1_29] : memref<4x18x18xf32, #tpu.memory_space<vmem>>, vector<1x16x16xf32>
      %39 = vector.shape_cast %38 : vector<1x16x16xf32> to vector<16x16xf32>
      %c4 = arith.constant 4 : index
      %c0_30 = arith.constant 0 : index
      %c0_31 = arith.constant 0 : index
      %40 = vector.load %arg6[%c4, %c0_30, %c0_31] : memref<9x16x16xf32, #tpu.memory_space<vmem>>, vector<1x16x16xf32>
      %41 = vector.shape_cast %40 : vector<1x16x16xf32> to vector<16x16xf32>
      %42 = arith.mulf %41, %39 : vector<16x16xf32>
      %43 = arith.addf %36, %42 : vector<16x16xf32>
      %44 = arith.index_cast %arg7 : i32 to index
      %c1_32 = arith.constant 1 : index
      %c2_33 = arith.constant 2 : index
      %45 = vector.load %arg5[%44, %c1_32, %c2_33] : memref<4x18x18xf32, #tpu.memory_space<vmem>>, vector<1x16x16xf32>
      %46 = vector.shape_cast %45 : vector<1x16x16xf32> to vector<16x16xf32>
      %c5 = arith.constant 5 : index
      %c0_34 = arith.constant 0 : index
      %c0_35 = arith.constant 0 : index
      %47 = vector.load %arg6[%c5, %c0_34, %c0_35] : memref<9x16x16xf32, #tpu.memory_space<vmem>>, vector<1x16x16xf32>
      %48 = vector.shape_cast %47 : vector<1x16x16xf32> to vector<16x16xf32>
      %49 = arith.mulf %48, %46 : vector<16x16xf32>
      %50 = arith.addf %43, %49 : vector<16x16xf32>
      %51 = arith.index_cast %arg7 : i32 to index
      %c2_36 = arith.constant 2 : index
      %c0_37 = arith.constant 0 : index
      %52 = vector.load %arg5[%51, %c2_36, %c0_37] : memref<4x18x18xf32, #tpu.memory_space<vmem>>, vector<1x16x16xf32>
      %53 = vector.shape_cast %52 : vector<1x16x16xf32> to vector<16x16xf32>
      %c6 = arith.constant 6 : index
      %c0_38 = arith.constant 0 : index
      %c0_39 = arith.constant 0 : index
      %54 = vector.load %arg6[%c6, %c0_38, %c0_39] : memref<9x16x16xf32, #tpu.memory_space<vmem>>, vector<1x16x16xf32>
      %55 = vector.shape_cast %54 : vector<1x16x16xf32> to vector<16x16xf32>
      %56 = arith.mulf %55, %53 : vector<16x16xf32>
      %57 = arith.addf %50, %56 : vector<16x16xf32>
      %58 = arith.index_cast %arg7 : i32 to index
      %c2_40 = arith.constant 2 : index
      %c1_41 = arith.constant 1 : index
      %59 = vector.load %arg5[%58, %c2_40, %c1_41] : memref<4x18x18xf32, #tpu.memory_space<vmem>>, vector<1x16x16xf32>
      %60 = vector.shape_cast %59 : vector<1x16x16xf32> to vector<16x16xf32>
      %c7 = arith.constant 7 : index
      %c0_42 = arith.constant 0 : index
      %c0_43 = arith.constant 0 : index
      %61 = vector.load %arg6[%c7, %c0_42, %c0_43] : memref<9x16x16xf32, #tpu.memory_space<vmem>>, vector<1x16x16xf32>
      %62 = vector.shape_cast %61 : vector<1x16x16xf32> to vector<16x16xf32>
      %63 = arith.mulf %62, %60 : vector<16x16xf32>
      %64 = arith.addf %57, %63 : vector<16x16xf32>
      %65 = arith.index_cast %arg7 : i32 to index
      %c2_44 = arith.constant 2 : index
      %c2_45 = arith.constant 2 : index
      %66 = vector.load %arg5[%65, %c2_44, %c2_45] : memref<4x18x18xf32, #tpu.memory_space<vmem>>, vector<1x16x16xf32>
      %67 = vector.shape_cast %66 : vector<1x16x16xf32> to vector<16x16xf32>
      %c8 = arith.constant 8 : index
      %c0_46 = arith.constant 0 : index
      %c0_47 = arith.constant 0 : index
      %68 = vector.load %arg6[%c8, %c0_46, %c0_47] : memref<9x16x16xf32, #tpu.memory_space<vmem>>, vector<1x16x16xf32>
      %69 = vector.shape_cast %68 : vector<1x16x16xf32> to vector<16x16xf32>
      %70 = arith.mulf %69, %67 : vector<16x16xf32>
      %71 = arith.addf %64, %70 : vector<16x16xf32>
      %c0_48 = arith.constant 0 : index
      %72 = arith.index_cast %arg7 : i32 to index
      %c0_49 = arith.constant 0 : index
      %c0_50 = arith.constant 0 : index
      %73 = vector.load %arg4[%c0_48, %72, %c0_49, %c0_50] : memref<1x4x16x16xf32, #tpu.memory_space<vmem>>, vector<1x1x16x16xf32>
      %74 = vector.shape_cast %73 : vector<1x1x16x16xf32> to vector<16x16xf32>
      %75 = vector.shape_cast %71 : vector<16x16xf32> to vector<1x1x16x16xf32>
      tpu.vector_store %arg4[%c0_48, %72, %c0_49, %c0_50], %75 {strides = array<i32>} : memref<1x4x16x16xf32, #tpu.memory_space<vmem>>, vector<1x1x16x16xf32>,
    }
    %c4_i32_9 = arith.constant 4 : i32
    return
  }
  func.func @transform_0(%arg0: i32, %arg1: i32) -> (i32, i32, i32, i32) {
    %c0_i32 = arith.constant 0 : i32
    %c0_i32_0 = arith.constant 0 : i32
    %c0_i32_1 = arith.constant 0 : i32
    return %arg0, %arg1, %c0_i32, %c0_i32_0 : i32, i32, i32, i32
  }
  func.func @transform_1(%arg0: i32, %arg1: i32) -> (i32, i32, i32, i32) {
    %c0_i32 = arith.constant 0 : i32
    %c0_i32_0 = arith.constant 0 : i32
    %c0_i32_1 = arith.constant 0 : i32
    %c0_i32_2 = arith.constant 0 : i32
    return %arg0, %c0_i32, %c0_i32_0, %c0_i32_1 : i32, i32, i32, i32
  }
  func.func @transform_2(%arg0: i32, %arg1: i32) -> (i32, i32, i32, i32) {
    %c0_i32 = arith.constant 0 : i32
    %c0_i32_0 = arith.constant 0 : i32
    %c0_i32_1 = arith.constant 0 : i32
    return %arg0, %arg1, %c0_i32, %c0_i32_0 : i32, i32, i32, i32
  }
}

</mosaic_0001>

<llo_original>
// kernel: tpu_custom_call.1
$region0: #{tpu_custom_call.1}
  #allocation0 [shape = 'u32[]', space=smem, size = 0x4, offset = 0x4, fixed_abs, tag = 'smem constant byte address 0x4 - core index']
  #allocation1 [shape = 'u32[144,128]{1,0:T(1,128)}', space=vmem, size = 0x12000, scoped, tag = 'internal scratch']
  #allocation2 [shape = 'f32[4,18,18]{2,1,0:T(8,128)}', space=vmem, size = 0xc000, scoped, tag = 'scratch operand']
  #allocation3 [shape = 'f32[9,16,16]{2,1,0:T(8,128)}', space=vmem, size = 0x12000, scoped, tag = 'scratch operand']
  %s0 = inlined_call_operand.hbm [shape: f32[2,4,16,16], index: 0, kind: input, shape index: {}]
  %s1 = inlined_call_operand.vmem [shape: f32[2,1,18,18], index: 1, kind: input, shape index: {}]
  %s2 = inlined_call_operand.hbm [shape: f32[2,4,16,16], index: 2, kind: output, shape index: {}]
  %s3 = sld [smem:[#allocation0]]
  $region60: #{tpu_custom_call.1} parent=0
    _
  %s5 = ssub.s32 1, %s3
  %s6 = scalar_select 0, %s5, %s3
  $region1: #{tpu_custom_call.1} parent=0
    #allocation4 [shape = 'u8[65536]{0}', space=vmem, size = 0x10000, scoped, tag = 'input window, operand 0']
    #allocation5 [shape = 's32[2]{0}', space=sflag, size = 0x8, scoped, tag = 'scoped memory for tpu_custom_call.1']
    #allocation6 [shape = 's32[2]{0}', space=sflag, size = 0x8, scoped, tag = 'scoped memory for tpu_custom_call.1']
    #allocation7 [shape = 'u8[65536]{0}', space=vmem, size = 0x10000, scoped, tag = 'output window, operand 0']
    %7 = vsyncpa [#allocation5], 0
    %s8 = scalar_lea.sflag [#allocation5], 1
    %9 = vsyncpa %s8, 0
    %10 = vsyncpa [#allocation6], 0
    %s11 = scalar_lea.sflag [#allocation6], 1
    %12 = vsyncpa %s11, 0
    loop: start=0, step=1, limit=4
    $region2: #{tpu_custom_call.1} parent=1 // loop_pre_header
      _
    $region3: #{tpu_custom_call.1} parent=1 // loop_header
      %s14 = sphi 0, %s18
      %p15 = scmp.ge.s32.totalorder %s14, 4
      %s21 = sphi 0, %s33
      %s22 = sphi 0, %s29
      %s23 = sphi 0, %s21
      %s24 = sphi 0, %s22
      %s25 = sphi 0, %s23
      %s26 = sphi 0, %s24
      %s38 = sphi 0, %s40
      %s41 = sphi 0, %s38
      %s42 = sphi 0, %s41
      %s58 = sphi 0, %s42
      %s64 = sphi 0, %s66
      %s67 = sphi 0, %s64
      %s68 = sphi 0, %s67
      %s84 = sphi 0, %s68
      %s92 = sphi 0, %s94
      %s95 = sphi 0, %s92
      %s96 = sphi 0, %s95
      %s112 = sphi 0, %s96
    $region4: #{tpu_custom_call.1} parent=1 // loop_header_branch
      %17 = sbr.rel (%p15) target = $region8
    $region5: #{tpu_custom_call.1} parent=1 // loop_body
      %s19 = ssub.s32 %s14, 1
      %s20 = ssub.s32 %s14, 2
      %s27 = sadd.s32 1, %s22
      %p28 = scmp.ge.s32.totalorder %s27, 1
      %s29 = scalar_select %p28, 0, %s27
      %s30 = sadd.s32 1, %s21
      %s31 = scalar_select %p28, %s30, %s21
      %p32 = scmp.ge.s32.totalorder %s31, 2
      %s33 = scalar_select %p32, 0, %s31
      %s34 = ssub.s32 %s21, %s33
      %s35 = ssub.s32 %s22, %s29
      %s36 = sor.u32 %s34, %s35
      %p37 = scmp.eq.s32.totalorder %s36, 0
      %s39 = sadd.s32 %s38, 1
      %s40 = scalar_select %p37, %s38, %s39
      %p43 = pneg %p37
      %p44 = scmp.eq.s32.totalorder %s14, 1
      %p45 = por %p43, %p44
      %p46 = scmp.ne.s32.totalorder %s38, %s41
      %p47 = scmp.eq.s32.totalorder %s14, 0
      %p48 = por %p46, %p47
      %p49 = scmp.ne.s32.totalorder %s38, %s41
      %p50 = scmp.eq.s32.totalorder %s19, 1
      %p51 = por %p49, %p50
      %p52 = scmp.ne.s32.totalorder %s41, %s42
      %p53 = scmp.eq.s32.totalorder %s19, 0
      %p54 = por %p52, %p53
      %p55 = scmp.ne.s32.totalorder %s41, %s42
      %p56 = scmp.eq.s32.totalorder %s20, 1
      %p57 = por %p55, %p56
      %p59 = scmp.ne.s32.totalorder %s42, %s58
      %p60 = scmp.eq.s32.totalorder %s20, 0
      %p61 = por %p59, %p60
      %s62 = ssub.s32 %s21, %s33
      %p63 = scmp.eq.s32.totalorder %s62, 0
      %s65 = sadd.s32 %s64, 1
      %s66 = scalar_select %p63, %s64, %s65
      %p69 = pneg %p63
      %p70 = scmp.eq.s32.totalorder %s14, 1
      %p71 = por %p69, %p70
      %p72 = scmp.ne.s32.totalorder %s64, %s67
      %p73 = scmp.eq.s32.totalorder %s14, 0
      %p74 = por %p72, %p73
      %p75 = scmp.ne.s32.totalorder %s64, %s67
      %p76 = scmp.eq.s32.totalorder %s19, 1
      %p77 = por %p75, %p76
      %p78 = scmp.ne.s32.totalorder %s67, %s68
      %p79 = scmp.eq.s32.totalorder %s19, 0
      %p80 = por %p78, %p79
      %p81 = scmp.ne.s32.totalorder %s67, %s68
      %p82 = scmp.eq.s32.totalorder %s20, 1
      %p83 = por %p81, %p82
      %p85 = scmp.ne.s32.totalorder %s68, %s84
      %p86 = scmp.eq.s32.totalorder %s20, 0
      %p87 = por %p85, %p86
      %s88 = ssub.s32 %s21, %s33
      %s89 = ssub.s32 %s22, %s29
      %s90 = sor.u32 %s88, %s89
      %p91 = scmp.eq.s32.totalorder %s90, 0
      %s93 = sadd.s32 %s92, 1
      %s94 = scalar_select %p91, %s92, %s93
      %p97 = pneg %p91
      %p98 = scmp.eq.s32.totalorder %s14, 1
      %p99 = por %p97, %p98
      %p100 = scmp.ne.s32.totalorder %s92, %s95
      %p101 = scmp.eq.s32.totalorder %s14, 0
      %p102 = por %p100, %p101
      %p103 = scmp.ne.s32.totalorder %s92, %s95
      %p104 = scmp.eq.s32.totalorder %s19, 1
      %p105 = por %p103, %p104
      %p106 = scmp.ne.s32.totalorder %s95, %s96
      %p107 = scmp.eq.s32.totalorder %s19, 0
      %p108 = por %p106, %p107
      %p109 = scmp.ne.s32.totalorder %s95, %s96
      %p110 = scmp.eq.s32.totalorder %s20, 1
      %p111 = por %p109, %p110
      %p113 = scmp.ne.s32.totalorder %s96, %s112
      %p114 = scmp.eq.s32.totalorder %s20, 0
      %p115 = por %p113, %p114
      %p116 = scmp.le.s32.totalorder 1, %s14
      %p117 = scmp.lt.s32.totalorder %s14, 3
      %p118 = pnand %p116, %p117
      %p119 = pneg %p118
      // Predicated region
      $region9: #{tpu_custom_call.1} parent=5 // pred_check
        _
      $region10: #{tpu_custom_call.1} parent=5 // pred_check_branch
        %121 = sbr.rel (%p118) target = $region12
      $region11: #{tpu_custom_call.1} parent=5 // pred_region
        %s122 = ssub.s32 %s14, 1
      $region12: #{tpu_custom_call.1} parent=5 // pred_fallthru
        _
      %p123 = scmp.lt.s32.totalorder %s14, 2
      // Predicated region
      $region13: #{tpu_custom_call.1} parent=5 // pred_check
        %p124 = pneg %p123
      $region14: #{tpu_custom_call.1} parent=5 // pred_check_branch
        %126 = sbr.rel (%p124) target = $region16
      $region15: #{tpu_custom_call.1} parent=5 // pred_region
        // Predicated region
        $region17: #{tpu_custom_call.1} parent=15 // pred_check
          %p127 = pneg %p48
        $region18: #{tpu_custom_call.1} parent=15 // pred_check_branch
          %129 = sbr.rel (%p127) target = $region20
        $region19: #{tpu_custom_call.1} parent=15 // pred_region
          %s130 = sand.u32 %s38, 1
          %s131 = scalar_lea.sflag [#allocation5], %s130
          %s132 = sand.u32 %s38, 1
          %s133 = smul.addr %s132, 64
          %s134 = scalar_lea.vmem [#allocation4], %s133
          %s135 = smul.u32 4, %s22
          %s137 = ssub.s32 1024, 1024
          %138 = vsyncadd %s131, %s137
          %s139 = smul.addr %s135, 2
          %s140 = smul.addr %s21, 8
          %s141 = sadd.s32 %s139, %s140
          %s142 = smul.addr %s141, 128
          %s143 = scalar_lea.hbm %s0, %s142
          %s144 = sshll.u32 %s134, 4
          %s145 = int_to_ptr.vmem [resolvable:$true] %s144
          %150 = dma.hbm_to_vmem [thread:$0]  %s143, 1024, %s145, %s131, 128, 128, 8
        $region20: #{tpu_custom_call.1} parent=15 // pred_fallthru
          _
        // Predicated region
        $region21: #{tpu_custom_call.1} parent=15 // pred_check
          %p151 = pneg %p74
        $region22: #{tpu_custom_call.1} parent=15 // pred_check_branch
          %153 = sbr.rel (%p151) target = $region24
        $region23: #{tpu_custom_call.1} parent=15 // pred_region
          %p154 = scmp.lt.s32.totalorder %s21, 1
          %s155 = scalar_select %p154, %s21, 1
          %s156 = smul.addr %s155, 3
          %s157 = smul.addr %s156, 8
          %s158 = scalar_lea.vmem %s1, %s157
        $region24: #{tpu_custom_call.1} parent=15 // pred_fallthru
          _
      $region16: #{tpu_custom_call.1} parent=5 // pred_fallthru
        _
      %p159 = scmp.le.s32.totalorder 1, %s14
      %p160 = scmp.lt.s32.totalorder %s14, 3
      %p161 = pnand %p159, %p160
      %p162 = pneg %p161
      // Predicated region
      $region25: #{tpu_custom_call.1} parent=5 // pred_check
        _
      $region26: #{tpu_custom_call.1} parent=5 // pred_check_branch
        %164 = sbr.rel (%p161) target = $region28
      $region27: #{tpu_custom_call.1} parent=5 // pred_region
        %s165 = ssub.s32 %s14, 1
        %s166 = sand.u32 %s41, 1
        %s167 = scalar_lea.sflag [#allocation5], %s166
        %s168 = sand.u32 %s41, 1
        %s169 = smul.addr %s168, 64
        %s170 = scalar_lea.vmem [#allocation4], %s169
        // Predicated region
        $region29: #{tpu_custom_call.1} parent=27 // pred_check
          %p171 = pneg %p54
        $region30: #{tpu_custom_call.1} parent=27 // pred_check_branch
          %173 = sbr.rel (%p171) target = $region32
        $region31: #{tpu_custom_call.1} parent=27 // pred_region
          %174 = dma.done %s167, 1024
        $region32: #{tpu_custom_call.1} parent=27 // pred_fallthru
          _
        %s175 = sand.u32 %s41, 1
        %s176 = scalar_lea.sflag [#allocation5], %s175
        %s177 = sand.u32 %s41, 1
        %s178 = smul.addr %s177, 64
        %s179 = scalar_lea.vmem [#allocation4], %s178
        %p180 = pneg %p54
        %p181 = pneg %p51
        %p182 = scmp.lt.s32.totalorder %s23, 1
        %s183 = scalar_select %p182, %s23, 1
        %s184 = smul.addr %s183, 3
        %s185 = smul.addr %s184, 8
        %s186 = scalar_lea.vmem %s1, %s185
        %p187 = pneg %p80
        %p188 = pneg %p77
        %p189 = pneg %p108
        %p190 = pneg %p105
        %s191 = sand.u32 %s95, 1
        %s192 = scalar_lea.sflag [#allocation6], %s191
        %s193 = sand.u32 %s95, 1
        %s194 = smul.addr %s193, 64
        %s195 = scalar_lea.vmem [#allocation7], %s194
        %s196 = smul.u32 4, %s24
        %p197 = scmp.lt.s32.totalorder %s23, 1
        %s198 = scalar_select %p197, %s23, 1
        %s199 = smul.addr %s198, 3
        %s200 = smul.addr %s199, 8
        %s201 = scalar_lea.vmem %s1, %s200
        %s202 = smul.u32 4, %s24
        %p203 = scmp.eq.s32.totalorder %s24, 0
        // Predicated region
        $region33: #{tpu_custom_call.1} parent=27 // pred_check
          %p204 = pneg %p203
        $region34: #{tpu_custom_call.1} parent=27 // pred_check_branch
          %206 = sbr.rel (%p204) target = $region36
        $region35: #{tpu_custom_call.1} parent=27 // pred_region
          %vm207 = vcmask 139264
          %208 = vst.msk [vmem:[#allocation2] sm:$0x1] %vm207, 0.0
          %209 = vst.msk [vmem:[#allocation2 + $0x18] sm:$0x1] %vm207, 0.0
          %210 = vst.msk [vmem:[#allocation2 + $0x30] sm:$0x1] %vm207, 0.0
          %211 = vst.msk [vmem:[#allocation2 + $0x48] sm:$0x1] %vm207, 0.0
          %212 = vst.msk [vmem:[#allocation2 + $0x11] sm:$0x1] %vm207, 0.0
          %213 = vst.msk [vmem:[#allocation2 + $0x29] sm:$0x1] %vm207, 0.0
          %214 = vst.msk [vmem:[#allocation2 + $0x41] sm:$0x1] %vm207, 0.0
          %215 = vst.msk [vmem:[#allocation2 + $0x59] sm:$0x1] %vm207, 0.0
          %vm216 = vcmask 7168
          %217 = vst.msk [vmem:[#allocation2 + $0x1] sm:$0xff] %vm216, 0.0
          %218 = vst.msk [vmem:[#allocation2 + $0x9] sm:$0xff] %vm216, 0.0
          %219 = vst.msk [vmem:[#allocation2 + $0x19] sm:$0xff] %vm216, 0.0
          %220 = vst.msk [vmem:[#allocation2 + $0x21] sm:$0xff] %vm216, 0.0
          %221 = vst.msk [vmem:[#allocation2 + $0x31] sm:$0xff] %vm216, 0.0
          %222 = vst.msk [vmem:[#allocation2 + $0x39] sm:$0xff] %vm216, 0.0
          %223 = vst.msk [vmem:[#allocation2 + $0x49] sm:$0xff] %vm216, 0.0
          %224 = vst.msk [vmem:[#allocation2 + $0x51] sm:$0xff] %vm216, 0.0
          %vm225 = vcmask 146568
          %226 = vst.msk [vmem:[#allocation2 + $0x1] sm:$0xff] %vm225, 0.0
          %227 = vst.msk [vmem:[#allocation2 + $0x9] sm:$0xff] %vm225, 0.0
          %228 = vst.msk [vmem:[#allocation2 + $0x19] sm:$0xff] %vm225, 0.0
          %229 = vst.msk [vmem:[#allocation2 + $0x21] sm:$0xff] %vm225, 0.0
          %230 = vst.msk [vmem:[#allocation2 + $0x31] sm:$0xff] %vm225, 0.0
          %231 = vst.msk [vmem:[#allocation2 + $0x39] sm:$0xff] %vm225, 0.0
          %232 = vst.msk [vmem:[#allocation2 + $0x49] sm:$0xff] %vm225, 0.0
          %233 = vst.msk [vmem:[#allocation2 + $0x51] sm:$0xff] %vm225, 0.0
        $region36: #{tpu_custom_call.1} parent=27 // pred_fallthru
          _
        %v234 = vld [vmem:[%s170] sm:$0xff]
        %v235 = vld [vmem:[%s170 + $0x8] sm:$0xff]
        %v236 = vld [vmem:[%s170 + $0x10] sm:$0xff]
        %v237 = vld [vmem:[%s170 + $0x18] sm:$0xff]
        %v238 = vld [vmem:[%s170 + $0x20] sm:$0xff]
        %v239 = vld [vmem:[%s170 + $0x28] sm:$0xff]
        %v240 = vld [vmem:[%s170 + $0x30] sm:$0xff]
        %v241 = vld [vmem:[%s170 + $0x38] sm:$0xff]
        %250 = vrot.lane.b32.xlu0 %v234, 1
        %v251 = vpop.permute.xlu0 %250
        %252 = vrot.lane.b32.xlu0 %v235, 1
        %v253 = vpop.permute.xlu0 %252
        %254 = vrot.lane.b32.xlu0 %v236, 1
        %v255 = vpop.permute.xlu0 %254
        %256 = vrot.lane.b32.xlu0 %v237, 1
        %v257 = vpop.permute.xlu0 %256
        %258 = vrot.lane.b32.xlu0 %v238, 1
        %v259 = vpop.permute.xlu0 %258
        %260 = vrot.lane.b32.xlu0 %v239, 1
        %v261 = vpop.permute.xlu0 %260
        %262 = vrot.lane.b32.xlu0 %v240, 1
        %v263 = vpop.permute.xlu0 %262
        %264 = vrot.lane.b32.xlu0 %v241, 1
        %v265 = vpop.permute.xlu0 %264
        %vm274 = vcmask 138248
        %275 = vst.msk [vmem:[#allocation2 + $0x1] sm:$0xff] %vm274, %v251
        %276 = vst.msk [vmem:[#allocation2 + $0x9] sm:$0xff] %vm274, %v253
        %277 = vst.msk [vmem:[#allocation2 + $0x19] sm:$0xff] %vm274, %v255
        %278 = vst.msk [vmem:[#allocation2 + $0x21] sm:$0xff] %vm274, %v257
        %279 = vst.msk [vmem:[#allocation2 + $0x31] sm:$0xff] %vm274, %v259
        %280 = vst.msk [vmem:[#allocation2 + $0x39] sm:$0xff] %vm274, %v261
        %281 = vst.msk [vmem:[#allocation2 + $0x49] sm:$0xff] %vm274, %v263
        %282 = vst.msk [vmem:[#allocation2 + $0x51] sm:$0xff] %vm274, %v265
        // Predicated region
        $region37: #{tpu_custom_call.1} parent=27 // pred_check
          %p283 = pneg %p203
        $region38: #{tpu_custom_call.1} parent=27 // pred_check_branch
          %285 = sbr.rel (%p283) target = $region40
        $region39: #{tpu_custom_call.1} parent=27 // pred_region
          %v286 = vld [vmem:[%s201 + $0x1] sm:$0xff]
          %v287 = vld [vmem:[%s201 + $0x9] sm:$0xff]
          %v288 = vld [vmem:[%s201] sm:$0xff]
          %v289 = vld [vmem:[%s201 + $0x8] sm:$0xff]
          %292 = vrot.lane.b32.xlu0 %v288, 1
          %v293 = vpop.permute.xlu0 %292
          %294 = vrot.lane.b32.xlu0 %v289, 1
          %v295 = vpop.permute.xlu0 %294
          %v298 = vsub.f32 %v286, %v293
          %v299 = vsub.f32 %v287, %v295
          %v300 = vand.u32 2147483647, %v298
          %v301 = vand.u32 2147483647, %v299
          %v302 = vmul.f32 %v300, -8.3
          %v303 = vmul.f32 %v301, -8.3
          %v304 = vmul.f32 %v302, 1.442695
          %v305 = vpow.pop %v304
          %v306 = vmul.f32 %v303, 1.442695
          %v307 = vpow.pop %v306
          %310 = vrot.lane.b32.xlu0 %v305, 127
          %v311 = vpop.permute.xlu0 %310
          %312 = vrot.lane.b32.xlu0 %v307, 127
          %v313 = vpop.permute.xlu0 %312
          %vm316 = vcmask 130048
          %317 = vst.msk [vmem:[#allocation3] sm:$0xff] %vm316, %v311
          %318 = vst.msk [vmem:[#allocation3 + $0x8] sm:$0xff] %vm316, %v313
          %v319 = vadd.f32 %v305, 0.0
          %v320 = vadd.f32 %v307, 0.0
          %v321 = vld [vmem:[%s201] sm:$0xff]
          %v322 = vld [vmem:[%s201 + $0x8] sm:$0xff]
          %v323 = vsub.f32 %v286, %v321
          %v324 = vsub.f32 %v287, %v322
          %v325 = vand.u32 2147483647, %v323
          %v326 = vand.u32 2147483647, %v324
          %v327 = vmul.f32 %v325, -8.3
          %v328 = vmul.f32 %v326, -8.3
          %v329 = vmul.f32 %v327, 1.442695
          %v330 = vpow.pop %v329
          %v331 = vmul.f32 %v328, 1.442695
          %v332 = vpow.pop %v331
          %335 = vrot.lane.b32.xlu0 %v330, 127
          %v336 = vpop.permute.xlu0 %335
          %337 = vrot.lane.b32.xlu0 %v332, 127
          %v338 = vpop.permute.xlu0 %337
          %s341 = scalar_lea.vmem [#allocation3], 16
          %342 = vst.msk [vmem:[%s341] sm:$0xff] %vm316, %v336
          %343 = vst.msk [vmem:[%s341 + $0x8] sm:$0xff] %vm316, %v338
          %v344 = vadd.f32 %v319, %v330
          %v345 = vadd.f32 %v320, %v332
          %v346 = vld [vmem:[%s201] sm:$0xff]
          %v347 = vld [vmem:[%s201 + $0x8] sm:$0xff]
          %350 = vrot.lane.b32.xlu0 %v346, 127
          %v351 = vpop.permute.xlu0 %350
          %352 = vrot.lane.b32.xlu0 %v347, 127
          %v353 = vpop.permute.xlu0 %352
          %v356 = vsub.f32 %v286, %v351
          %v357 = vsub.f32 %v287, %v353
          %v358 = vand.u32 2147483647, %v356
          %v359 = vand.u32 2147483647, %v357
          %v360 = vmul.f32 %v358, -8.3
          %v361 = vmul.f32 %v359, -8.3
          %v362 = vmul.f32 %v360, 1.442695
          %v363 = vpow.pop %v362
          %v364 = vmul.f32 %v361, 1.442695
          %v365 = vpow.pop %v364
          %368 = vrot.lane.b32.xlu0 %v363, 127
          %v369 = vpop.permute.xlu0 %368
          %370 = vrot.lane.b32.xlu0 %v365, 127
          %v371 = vpop.permute.xlu0 %370
          %s374 = scalar_lea.vmem [#allocation3], 32
          %375 = vst.msk [vmem:[%s374] sm:$0xff] %vm316, %v369
          %376 = vst.msk [vmem:[%s374 + $0x8] sm:$0xff] %vm316, %v371
          %v377 = vadd.f32 %v344, %v363
          %v378 = vadd.f32 %v345, %v365
          %v379 = vld [vmem:[%s201 + $0x1] sm:$0xff]
          %v380 = vld [vmem:[%s201 + $0x9] sm:$0xff]
          %383 = vrot.lane.b32.xlu0 %v379, 1
          %v384 = vpop.permute.xlu0 %383
          %385 = vrot.lane.b32.xlu0 %v380, 1
          %v386 = vpop.permute.xlu0 %385
          %v389 = vsub.f32 %v286, %v384
          %v390 = vsub.f32 %v287, %v386
          %v391 = vand.u32 2147483647, %v389
          %v392 = vand.u32 2147483647, %v390
          %v393 = vmul.f32 %v391, -8.3
          %v394 = vmul.f32 %v392, -8.3
          %v395 = vmul.f32 %v393, 1.442695
          %v396 = vpow.pop %v395
          %v397 = vmul.f32 %v394, 1.442695
          %v398 = vpow.pop %v397
          %401 = vrot.lane.b32.xlu0 %v396, 127
          %v402 = vpop.permute.xlu0 %401
          %403 = vrot.lane.b32.xlu0 %v398, 127
          %v404 = vpop.permute.xlu0 %403
          %s407 = scalar_lea.vmem [#allocation3], 48
          %408 = vst.msk [vmem:[%s407] sm:$0xff] %vm316, %v402
          %409 = vst.msk [vmem:[%s407 + $0x8] sm:$0xff] %vm316, %v404
          %v410 = vadd.f32 %v377, %v396
          %v411 = vadd.f32 %v378, %v398
          %v412 = vld [vmem:[%s201 + $0x1] sm:$0xff]
          %v413 = vld [vmem:[%s201 + $0x9] sm:$0xff]
          %v414 = vsub.f32 %v286, %v412
          %v415 = vsub.f32 %v287, %v413
          %v416 = vand.u32 2147483647, %v414
          %v417 = vand.u32 2147483647, %v415
          %v418 = vmul.f32 %v416, -8.3
          %v419 = vmul.f32 %v417, -8.3
          %v420 = vmul.f32 %v418, 1.442695
          %v421 = vpow.pop %v420
          %v422 = vmul.f32 %v419, 1.442695
          %v423 = vpow.pop %v422
          %426 = vrot.lane.b32.xlu0 %v421, 127
          %v427 = vpop.permute.xlu0 %426
          %428 = vrot.lane.b32.xlu0 %v423, 127
          %v429 = vpop.permute.xlu0 %428
          %s432 = scalar_lea.vmem [#allocation3], 64
          %433 = vst.msk [vmem:[%s432] sm:$0xff] %vm316, %v427
          %434 = vst.msk [vmem:[%s432 + $0x8] sm:$0xff] %vm316, %v429
          %v435 = vadd.f32 %v410, %v421
          %v436 = vadd.f32 %v411, %v423
          %v437 = vld [vmem:[%s201 + $0x1] sm:$0xff]
          %v438 = vld [vmem:[%s201 + $0x9] sm:$0xff]
          %441 = vrot.lane.b32.xlu0 %v437, 127
          %v442 = vpop.permute.xlu0 %441
          %443 = vrot.lane.b32.xlu0 %v438, 127
          %v444 = vpop.permute.xlu0 %443
          %v447 = vsub.f32 %v286, %v442
          %v448 = vsub.f32 %v287, %v444
          %v449 = vand.u32 2147483647, %v447
          %v450 = vand.u32 2147483647, %v448
          %v451 = vmul.f32 %v449, -8.3
          %v452 = vmul.f32 %v450, -8.3
          %v453 = vmul.f32 %v451, 1.442695
          %v454 = vpow.pop %v453
          %v455 = vmul.f32 %v452, 1.442695
          %v456 = vpow.pop %v455
          %459 = vrot.lane.b32.xlu0 %v454, 127
          %v460 = vpop.permute.xlu0 %459
          %461 = vrot.lane.b32.xlu0 %v456, 127
          %v462 = vpop.permute.xlu0 %461
          %s465 = scalar_lea.vmem [#allocation3], 80
          %466 = vst.msk [vmem:[%s465] sm:$0xff] %vm316, %v460
          %467 = vst.msk [vmem:[%s465 + $0x8] sm:$0xff] %vm316, %v462
          %v468 = vadd.f32 %v435, %v454
          %v469 = vadd.f32 %v436, %v456
          %v470 = vld [vmem:[%s201 + $0x2] sm:$0xff]
          %v471 = vld [vmem:[%s201 + $0xa] sm:$0xff]
          %474 = vrot.lane.b32.xlu0 %v470, 1
          %v475 = vpop.permute.xlu0 %474
          %476 = vrot.lane.b32.xlu0 %v471, 1
          %v477 = vpop.permute.xlu0 %476
          %v480 = vsub.f32 %v286, %v475
          %v481 = vsub.f32 %v287, %v477
          %v482 = vand.u32 2147483647, %v480
          %v483 = vand.u32 2147483647, %v481
          %v484 = vmul.f32 %v482, -8.3
          %v485 = vmul.f32 %v483, -8.3
          %v486 = vmul.f32 %v484, 1.442695
          %v487 = vpow.pop %v486
          %v488 = vmul.f32 %v485, 1.442695
          %v489 = vpow.pop %v488
          %492 = vrot.lane.b32.xlu0 %v487, 127
          %v493 = vpop.permute.xlu0 %492
          %494 = vrot.lane.b32.xlu0 %v489, 127
          %v495 = vpop.permute.xlu0 %494
          %s498 = scalar_lea.vmem [#allocation3], 96
          %499 = vst.msk [vmem:[%s498] sm:$0xff] %vm316, %v493
          %500 = vst.msk [vmem:[%s498 + $0x8] sm:$0xff] %vm316, %v495
          %v501 = vadd.f32 %v468, %v487
          %v502 = vadd.f32 %v469, %v489
          %v503 = vld [vmem:[%s201 + $0x2] sm:$0xff]
          %v504 = vld [vmem:[%s201 + $0xa] sm:$0xff]
          %v505 = vsub.f32 %v286, %v503
          %v506 = vsub.f32 %v287, %v504
          %v507 = vand.u32 2147483647, %v505
          %v508 = vand.u32 2147483647, %v506
          %v509 = vmul.f32 %v507, -8.3
          %v510 = vmul.f32 %v508, -8.3
          %v511 = vmul.f32 %v509, 1.442695
          %v512 = vpow.pop %v511
          %v513 = vmul.f32 %v510, 1.442695
          %v514 = vpow.pop %v513
          %517 = vrot.lane.b32.xlu0 %v512, 127
          %v518 = vpop.permute.xlu0 %517
          %519 = vrot.lane.b32.xlu0 %v514, 127
          %v520 = vpop.permute.xlu0 %519
          %s523 = scalar_lea.vmem [#allocation3], 112
          %524 = vst.msk [vmem:[%s523] sm:$0xff] %vm316, %v518
          %525 = vst.msk [vmem:[%s523 + $0x8] sm:$0xff] %vm316, %v520
          %v526 = vadd.f32 %v501, %v512
          %v527 = vadd.f32 %v502, %v514
          %v528 = vld [vmem:[%s201 + $0x2] sm:$0xff]
          %v529 = vld [vmem:[%s201 + $0xa] sm:$0xff]
          %532 = vrot.lane.b32.xlu0 %v528, 127
          %v533 = vpop.permute.xlu0 %532
          %534 = vrot.lane.b32.xlu0 %v529, 127
          %v535 = vpop.permute.xlu0 %534
          %v538 = vsub.f32 %v286, %v533
          %v539 = vsub.f32 %v287, %v535
          %v540 = vand.u32 2147483647, %v538
          %v541 = vand.u32 2147483647, %v539
          %v542 = vmul.f32 %v540, -8.3
          %v543 = vmul.f32 %v541, -8.3
          %v544 = vmul.f32 %v542, 1.442695
          %v545 = vpow.pop %v544
          %v546 = vmul.f32 %v543, 1.442695
          %v547 = vpow.pop %v546
          %550 = vrot.lane.b32.xlu0 %v545, 127
          %v551 = vpop.permute.xlu0 %550
          %552 = vrot.lane.b32.xlu0 %v547, 127
          %v553 = vpop.permute.xlu0 %552
          %s556 = scalar_lea.vmem [#allocation3], 128
          %557 = vst.msk [vmem:[%s556] sm:$0xff] %vm316, %v551
          %558 = vst.msk [vmem:[%s556 + $0x8] sm:$0xff] %vm316, %v553
          %v559 = vadd.f32 %v526, %v545
          %v560 = vadd.f32 %v527, %v547
          %v561 = vrcp.pop %v559
          %v562 = vrcp.pop %v560
          %v563 = vld [vmem:[#allocation3] sm:$0xff]
          %v564 = vld [vmem:[#allocation3 + $0x8] sm:$0xff]
          %567 = vrot.lane.b32.xlu0 %v561, 127
          %v568 = vpop.permute.xlu0 %567
          %569 = vrot.lane.b32.xlu0 %v562, 127
          %v570 = vpop.permute.xlu0 %569
          %v573 = vmul.f32 %v563, %v568
          %v574 = vmul.f32 %v564, %v570
          %575 = vst.msk [vmem:[#allocation3] sm:$0xff] %vm316, %v573
          %576 = vst.msk [vmem:[#allocation3 + $0x8] sm:$0xff] %vm316, %v574
          %v577 = vld [vmem:[%s341] sm:$0xff]
          %v578 = vld [vmem:[%s341 + $0x8] sm:$0xff]
          %v579 = vmul.f32 %v577, %v568
          %v580 = vmul.f32 %v578, %v570
          %581 = vst.msk [vmem:[%s341] sm:$0xff] %vm316, %v579
          %582 = vst.msk [vmem:[%s341 + $0x8] sm:$0xff] %vm316, %v580
          %v583 = vld [vmem:[%s374] sm:$0xff]
          %v584 = vld [vmem:[%s374 + $0x8] sm:$0xff]
          %v585 = vmul.f32 %v583, %v568
          %v586 = vmul.f32 %v584, %v570
          %587 = vst.msk [vmem:[%s374] sm:$0xff] %vm316, %v585
          %588 = vst.msk [vmem:[%s374 + $0x8] sm:$0xff] %vm316, %v586
          %v589 = vld [vmem:[%s407] sm:$0xff]
          %v590 = vld [vmem:[%s407 + $0x8] sm:$0xff]
          %v591 = vmul.f32 %v589, %v568
          %v592 = vmul.f32 %v590, %v570
          %593 = vst.msk [vmem:[%s407] sm:$0xff] %vm316, %v591
          %594 = vst.msk [vmem:[%s407 + $0x8] sm:$0xff] %vm316, %v592
          %v595 = vld [vmem:[%s432] sm:$0xff]
          %v596 = vld [vmem:[%s432 + $0x8] sm:$0xff]
          %v597 = vmul.f32 %v595, %v568
          %v598 = vmul.f32 %v596, %v570
          %599 = vst.msk [vmem:[%s432] sm:$0xff] %vm316, %v597
          %600 = vst.msk [vmem:[%s432 + $0x8] sm:$0xff] %vm316, %v598
          %v601 = vld [vmem:[%s465] sm:$0xff]
          %v602 = vld [vmem:[%s465 + $0x8] sm:$0xff]
          %v603 = vmul.f32 %v601, %v568
          %v604 = vmul.f32 %v602, %v570
          %605 = vst.msk [vmem:[%s465] sm:$0xff] %vm316, %v603
          %606 = vst.msk [vmem:[%s465 + $0x8] sm:$0xff] %vm316, %v604
          %v607 = vld [vmem:[%s498] sm:$0xff]
          %v608 = vld [vmem:[%s498 + $0x8] sm:$0xff]
          %v609 = vmul.f32 %v607, %v568
          %v610 = vmul.f32 %v608, %v570
          %611 = vst.msk [vmem:[%s498] sm:$0xff] %vm316, %v609
          %612 = vst.msk [vmem:[%s498 + $0x8] sm:$0xff] %vm316, %v610
          %v613 = vld [vmem:[%s523] sm:$0xff]
          %v614 = vld [vmem:[%s523 + $0x8] sm:$0xff]
          %v615 = vmul.f32 %v613, %v568
          %v616 = vmul.f32 %v614, %v570
          %617 = vst.msk [vmem:[%s523] sm:$0xff] %vm316, %v615
          %618 = vst.msk [vmem:[%s523 + $0x8] sm:$0xff] %vm316, %v616
          %v619 = vld [vmem:[%s556] sm:$0xff]
          %v620 = vld [vmem:[%s556 + $0x8] sm:$0xff]
          %v621 = vmul.f32 %v619, %v568
          %v622 = vmul.f32 %v620, %v570
          %623 = vst.msk [vmem:[%s556] sm:$0xff] %vm316, %v621
          %624 = vst.msk [vmem:[%s556 + $0x8] sm:$0xff] %vm316, %v622
        $region40: #{tpu_custom_call.1} parent=27 // pred_fallthru
          _
        loop: start=0, step=1, limit=4
        $region41: #{tpu_custom_call.1} parent=27 // loop_pre_header
          _
        $region42: #{tpu_custom_call.1} parent=27 // loop_header
          %s626 = sphi 0, %s630
          %p627 = scmp.ge.s32.totalorder %s626, 4
        $region43: #{tpu_custom_call.1} parent=27 // loop_header_branch
          %629 = sbr.rel (%p627) target = $region47
        $region44: #{tpu_custom_call.1} parent=27 // loop_body
          %s631 = smul.u32 %s626, 24
          %s632 = scalar_lea.vmem [#allocation2], %s631
          %v633 = vld [vmem:[%s632] sm:$0xff]
          %v634 = vld [vmem:[%s632 + $0x8] sm:$0xff]
          %v635 = vld [vmem:[#allocation3] sm:$0xff]
          %v636 = vld [vmem:[#allocation3 + $0x8] sm:$0xff]
          %v637 = vmul.f32 %v635, %v633
          %v638 = vmul.f32 %v636, %v634
          %s639 = scalar_lea.vmem [#allocation3], 16
          %v640 = vld [vmem:[%s639] sm:$0xff]
          %v641 = vld [vmem:[%s639 + $0x8] sm:$0xff]
          %644 = vrot.lane.b32.xlu0 %v633, 127
          %v645 = vpop.permute.xlu0 %644
          %646 = vrot.lane.b32.xlu0 %v634, 127
          %v647 = vpop.permute.xlu0 %646
          %v650 = vmul.f32 %v640, %v645
          %v651 = vmul.f32 %v641, %v647
          %v652 = vadd.f32 %v637, %v650
          %v653 = vadd.f32 %v638, %v651
          %s654 = scalar_lea.vmem [#allocation3], 32
          %v655 = vld [vmem:[%s654] sm:$0xff]
          %v656 = vld [vmem:[%s654 + $0x8] sm:$0xff]
          %657 = vrot.lane.b32.xlu0 %v633, 126
          %v658 = vpop.permute.xlu0 %657
          %659 = vrot.lane.b32.xlu0 %v634, 126
          %v660 = vpop.permute.xlu0 %659
          %v663 = vmul.f32 %v655, %v658
          %v664 = vmul.f32 %v656, %v660
          %v665 = vadd.f32 %v652, %v663
          %v666 = vadd.f32 %v653, %v664
          %v667 = vld [vmem:[%s632 + $0x1] sm:$0xff]
          %v668 = vld [vmem:[%s632 + $0x9] sm:$0xff]
          %s669 = scalar_lea.vmem [#allocation3], 48
          %v670 = vld [vmem:[%s669] sm:$0xff]
          %v671 = vld [vmem:[%s669 + $0x8] sm:$0xff]
          %v672 = vmul.f32 %v670, %v667
          %v673 = vmul.f32 %v671, %v668
          %v674 = vadd.f32 %v665, %v672
          %v675 = vadd.f32 %v666, %v673
          %s676 = scalar_lea.vmem [#allocation3], 64
          %v677 = vld [vmem:[%s676] sm:$0xff]
          %v678 = vld [vmem:[%s676 + $0x8] sm:$0xff]
          %681 = vrot.lane.b32.xlu0 %v667, 127
          %v682 = vpop.permute.xlu0 %681
          %683 = vrot.lane.b32.xlu0 %v668, 127
          %v684 = vpop.permute.xlu0 %683
          %v687 = vmul.f32 %v677, %v682
          %v688 = vmul.f32 %v678, %v684
          %v689 = vadd.f32 %v674, %v687
          %v690 = vadd.f32 %v675, %v688
          %s691 = scalar_lea.vmem [#allocation3], 80
          %v692 = vld [vmem:[%s691] sm:$0xff]
          %v693 = vld [vmem:[%s691 + $0x8] sm:$0xff]
          %694 = vrot.lane.b32.xlu0 %v667, 126
          %v695 = vpop.permute.xlu0 %694
          %696 = vrot.lane.b32.xlu0 %v668, 126
          %v697 = vpop.permute.xlu0 %696
          %v700 = vmul.f32 %v692, %v695
          %v701 = vmul.f32 %v693, %v697
          %v702 = vadd.f32 %v689, %v700
          %v703 = vadd.f32 %v690, %v701
          %v704 = vld [vmem:[%s632 + $0x2] sm:$0xff]
          %v705 = vld [vmem:[%s632 + $0xa] sm:$0xff]
          %s706 = scalar_lea.vmem [#allocation3], 96
          %v707 = vld [vmem:[%s706] sm:$0xff]
          %v708 = vld [vmem:[%s706 + $0x8] sm:$0xff]
          %v709 = vmul.f32 %v707, %v704
          %v710 = vmul.f32 %v708, %v705
          %v711 = vadd.f32 %v702, %v709
          %v712 = vadd.f32 %v703, %v710
          %s713 = scalar_lea.vmem [#allocation3], 112
          %v714 = vld [vmem:[%s713] sm:$0xff]
          %v715 = vld [vmem:[%s713 + $0x8] sm:$0xff]
          %718 = vrot.lane.b32.xlu0 %v704, 127
          %v719 = vpop.permute.xlu0 %718
          %720 = vrot.lane.b32.xlu0 %v705, 127
          %v721 = vpop.permute.xlu0 %720
          %v724 = vmul.f32 %v714, %v719
          %v725 = vmul.f32 %v715, %v721
          %v726 = vadd.f32 %v711, %v724
          %v727 = vadd.f32 %v712, %v725
          %s728 = scalar_lea.vmem [#allocation3], 128
          %v729 = vld [vmem:[%s728] sm:$0xff]
          %v730 = vld [vmem:[%s728 + $0x8] sm:$0xff]
          %731 = vrot.lane.b32.xlu0 %v704, 126
          %v732 = vpop.permute.xlu0 %731
          %733 = vrot.lane.b32.xlu0 %v705, 126
          %v734 = vpop.permute.xlu0 %733
          %v737 = vmul.f32 %v729, %v732
          %v738 = vmul.f32 %v730, %v734
          %v739 = vadd.f32 %v726, %v737
          %v740 = vadd.f32 %v727, %v738
          %s741 = smul.u32 %s626, 16
          %s742 = scalar_lea.vmem %s195, %s741 [#allocation7]
          %vm743 = vcmask 130048
          %744 = vst.msk [vmem:[%s742] sm:$0xff] %vm743, %v739
          %745 = vst.msk [vmem:[%s742 + $0x8] sm:$0xff] %vm743, %v740
        $region45: #{tpu_custom_call.1} parent=27 // loop_footer
          %s630 = sadd.s32 1, %s626
        $region46: #{tpu_custom_call.1} parent=27 // loop_footer_branch
          %625 = sbr.rel target = $region42
        $region47: #{tpu_custom_call.1} parent=27 // loop_exit
          _
        %s746 = sand.u32 %s95, 1
        %s747 = scalar_lea.sflag [#allocation6], %s746
        %s748 = sand.u32 %s95, 1
        %s749 = smul.addr %s748, 64
        %s750 = scalar_lea.vmem [#allocation7], %s749
        // Predicated region
        $region48: #{tpu_custom_call.1} parent=27 // pred_check
          %p751 = pneg %p105
        $region49: #{tpu_custom_call.1} parent=27 // pred_check_branch
          %753 = sbr.rel (%p751) target = $region51
        $region50: #{tpu_custom_call.1} parent=27 // pred_region
          %s754 = smul.u32 4, %s24
          %s756 = ssub.s32 1024, 1024
          %757 = vsyncadd %s747, %s756
          %s758 = smul.addr %s754, 2
          %s759 = smul.addr %s23, 8
          %s760 = sadd.s32 %s758, %s759
          %s761 = smul.addr %s760, 128
          %s762 = scalar_lea.hbm %s2, %s761
          %s763 = sshll.u32 %s750, 4
          %s764 = int_to_ptr.vmem [resolvable:$true] %s763
          %769 = dma.vmem_to_hbm [thread:$0]  %s764, 1024, %s762, %s747, 128, 128, 8
        $region51: #{tpu_custom_call.1} parent=27 // pred_fallthru
          _
      $region28: #{tpu_custom_call.1} parent=5 // pred_fallthru
        _
      %p770 = scmp.le.s32.totalorder 2, %s14
      // Predicated region
      $region52: #{tpu_custom_call.1} parent=5 // pred_check
        %p771 = pneg %p770
      $region53: #{tpu_custom_call.1} parent=5 // pred_check_branch
        %773 = sbr.rel (%p771) target = $region55
      $region54: #{tpu_custom_call.1} parent=5 // pred_region
        %s774 = ssub.s32 %s14, 2
        // Predicated region
        $region56: #{tpu_custom_call.1} parent=54 // pred_check
          %p775 = pneg %p111
        $region57: #{tpu_custom_call.1} parent=54 // pred_check_branch
          %777 = sbr.rel (%p775) target = $region59
        $region58: #{tpu_custom_call.1} parent=54 // pred_region
          %s778 = sand.u32 %s96, 1
          %s779 = scalar_lea.sflag [#allocation6], %s778
          %s780 = sand.u32 %s96, 1
          %s781 = smul.addr %s780, 64
          %s782 = scalar_lea.vmem [#allocation7], %s781
          %783 = dma.done %s779, 1024
        $region59: #{tpu_custom_call.1} parent=54 // pred_fallthru
          _
      $region55: #{tpu_custom_call.1} parent=5 // pred_fallthru
        _
    $region6: #{tpu_custom_call.1} parent=1 // loop_footer
      %s18 = sadd.s32 1, %s14
    $region7: #{tpu_custom_call.1} parent=1 // loop_footer_branch
      %13 = sbr.rel target = $region3
    $region8: #{tpu_custom_call.1} parent=1 // loop_exit
      _
    %784 = vsyncpa [#allocation5], 1
    %s785 = scalar_lea.sflag [#allocation5], 1
    %786 = vsyncpa %s785, 1
    %787 = vsyncpa [#allocation6], 1
    %s788 = scalar_lea.sflag [#allocation6], 1
    %789 = vsyncpa %s788, 1

</llo_original>
